<compile_context>
chip_gen: v5e
topology: v5e:2x2
jax: 0.10.0
libtpu: 0.0.40
codegen_flags: <defaults>
</compile_context>

<pallas_src>
import jax
import jax.numpy as jnp
from jax.experimental import pallas as pl
from jax.experimental.pallas import tpu as pltpu

KSIZE = 3       # Conv1d kernel size fixed by the module
N_CHAINS = 4    # independent accumulator chains (4 VALU slots/bundle, no f32 FMA)


def _mac_chains(term_fn, n_in, bias_row):
    """Sum of KSIZE*n_in terms using N_CHAINS independent accumulator chains.

    term_fn(k, c) -> (bt, cout, Lx) f32 product for tap k / input channel c.
    bias_row: (cout, 1) f32, added once at the end (implicit broadcast).
    """
    chains = [None] * N_CHAINS
    t = 0
    for k in range(KSIZE):
        for c in range(n_in):
            term = term_fn(k, c)
            j = t % N_CHAINS
            chains[j] = term if chains[j] is None else chains[j] + term
            t += 1
    live = [ch for ch in chains if ch is not None]
    # small pairwise reduction tree
    while len(live) > 1:
        nxt = [live[a] + live[a + 1] for a in range(0, len(live) - 1, 2)]
        if len(live) % 2:
            nxt.append(live[-1])
        live = nxt
    return live[0] + bias_row


def _block_kernel(x_ref, w1_ref, b1_ref, w2_ref, b2_ref, o_ref, h_ref):
    """One batch tile per grid step; NCL layout (length on lanes).

    x_ref : (bt, Cin,  L)          VMEM
    w1_ref: (K*Cin,  Cout, 1)      VMEM   w1_ref[k*Cin + c, o, 0] == torch_w1[o, c, k]
    b1_ref: (Cout, 1)              VMEM
    w2_ref: (K*Cout, Cout, 1)      VMEM   w2_ref[k*Cout + c, o, 0] == torch_w2[o, c, k]
    b2_ref: (Cout, 1)              VMEM
    o_ref : (bt, Cout, L - 4)      VMEM
    h_ref : (bt, Cout, L - 2) f32  VMEM scratch (ReLU intermediate)
    """
    bt, cin, L = x_ref.shape
    cout = o_ref.shape[1]
    L1 = L - (KSIZE - 1)           # length after first conv
    L2 = L1 - (KSIZE - 1)          # length after second conv

    w1 = w1_ref[...].astype(jnp.float32)   # (K*Cin,  Cout, 1)  tiny
    w2 = w2_ref[...].astype(jnp.float32)   # (K*Cout, Cout, 1)  tiny
    b1 = b1_ref[...].astype(jnp.float32)   # (Cout, 1)
    b2 = b2_ref[...].astype(jnp.float32)   # (Cout, 1)

    # ---- Conv1 (valid): K*Cin VPU broadcast MACs, 4 independent chains ----
    # Ref-window load (bt,1,L1) * weight row (Cout,1) -> (bt,Cout,L1), f32 by promotion.
    def term1(k, c):
        return x_ref[:, c:c + 1, k:k + L1] * w1[k * cin + c]

    acc1 = _mac_chains(term1, cin, b1)          # (bt, Cout, L1) f32
    h_ref[...] = jnp.maximum(acc1, 0.0)         # ReLU intermediate in VMEM scratch

    # ---- Conv2 (valid): K*Cout VPU broadcast MACs from the scratch Ref ----
    def term2(k, c):
        return h_ref[:, c:c + 1, k:k + L2] * w2[k * cout + c]

    acc2 = _mac_chains(term2, cout, b2)         # (bt, Cout, L2) f32
    o_ref[...] = acc2.astype(o_ref.dtype)       # lane-dense store (L on lanes)


def block_forward(x_ncl, w1, b1, w2, b2):
    """x_ncl: (B, Cin, L) -- PyTorch NCL layout (kept as-is, no transposes).
    w1: (Cout, Cin, 3), b1: (Cout,), w2: (Cout, Cout, 3), b2: (Cout,)
    Returns (B, Cout, L-4), matching nn.Sequential(Conv1d, ReLU, Conv1d)."""
    B, cin, L = x_ncl.shape
    cout = w1.shape[0]
    L1 = L - (KSIZE - 1)
    L_out = L - 2 * (KSIZE - 1)
    assert L_out >= 1, "input length too short for two valid 3-tap convs"

    itemsize = jnp.dtype(x_ncl.dtype).itemsize

    # One-off, tiny weight/bias relayout (grid-invariant; activations untouched).
    w1_k = jnp.transpose(w1, (2, 1, 0)).reshape(KSIZE * cin, cout)[..., None]   # (K*Cin,  Cout, 1)
    w2_k = jnp.transpose(w2, (2, 1, 0)).reshape(KSIZE * cout, cout)[..., None]  # (K*Cout, Cout, 1)
    b1_r = b1[:, None]                                                          # (Cout, 1)
    b2_r = b2[:, None]

    # --- Batch-tile choice: pick the number of balanced grid steps first ----
    # Per-row VMEM footprint: x block + f32 h scratch + out block + live f32
    # accumulator chains (the dominant transient).
    bytes_per_row = (cin * L * itemsize
                     + cout * L1 * 4
                     + cout * L_out * itemsize
                     + (N_CHAINS + 1) * cout * L1 * 4)
    target_block_bytes = 2 * 1024 * 1024          # ~2 MiB per step, pre double-buffering
    if B == 1:
        n_steps = 1
    else:
        n_steps = max(2, pl.cdiv(B * bytes_per_row, target_block_bytes))  # >=2: both v7x TCs busy
        n_steps = min(n_steps, B)
        if (n_steps % 2) and (n_steps < B):
            n_steps += 1                          # even step count -> balanced across 2 TCs
    bt = pl.cdiv(B, n_steps)
    n_steps = pl.cdiv(B, bt)                      # re-balance after rounding
    grid = (n_steps,)
    # TODO(synk): for B==1 with very long L, also tile L with a 2*(KSIZE-1)=4 lane halo
    # (pl.ANY input + make_async_copy) so per-step VMEM stays bounded on v7x.

    # --- VMEM budget derived from the actual footprint (v7x: 64 MiB/TC) -----
    weight_bytes = ((w1_k.size + w2_k.size) * jnp.dtype(w1_k.dtype).itemsize
                    + (b1_r.size + b2_r.size) * jnp.dtype(b1_r.dtype).itemsize)
    block_bytes = bt * (cin * L + cout * L_out) * itemsize
    scratch_bytes = bt * cout * L1 * 4
    acc_bytes = (N_CHAINS + 1) * bt * cout * L1 * 4
    vmem_needed = 2 * block_bytes + 2 * weight_bytes + scratch_bytes + acc_bytes
    vmem_limit = int(min(96 * 1024 * 1024, max(4 * 1024 * 1024, 2 * vmem_needed)))

    flops = 2 * B * cout * KSIZE * (L1 * cin + L_out * cout) + B * cout * L1
    bytes_accessed = int(
        x_ncl.size * itemsize
        + B * cout * L_out * itemsize
        + weight_bytes)

    out = pl.pallas_call(
        _block_kernel,
        out_shape=jax.ShapeDtypeStruct((B, cout, L_out), x_ncl.dtype),
        grid_spec=pltpu.PrefetchScalarGridSpec(
            num_scalar_prefetch=0,
            grid=grid,
            in_specs=[
                pl.BlockSpec((bt, cin, L), lambda i: (i, 0, 0)),
                pl.BlockSpec((KSIZE * cin, cout, 1), lambda i: (0, 0, 0)),
                pl.BlockSpec((cout, 1), lambda i: (0, 0)),
                pl.BlockSpec((KSIZE * cout, cout, 1), lambda i: (0, 0, 0)),
                pl.BlockSpec((cout, 1), lambda i: (0, 0)),
            ],
            out_specs=pl.BlockSpec((bt, cout, L_out), lambda i: (i, 0, 0)),
            scratch_shapes=[pltpu.VMEM((bt, cout, L1), jnp.float32)],
        ),
        compiler_params=pltpu.CompilerParams(
            dimension_semantics=("parallel",),
            vmem_limit_bytes=vmem_limit,
        ),
        cost_estimate=pl.CostEstimate(
            flops=flops, transcendentals=0, bytes_accessed=bytes_accessed),
    )(x_ncl, w1_k, b1_r, w2_k, b2_r)

    return out


def _reference(x_ncl, w1, b1, w2, b2):
    """Pure-JAX reference (same semantics as the PyTorch module)."""
    dn = jax.lax.conv_dimension_numbers(x_ncl.shape, w1.shape, ("NCH", "OIH", "NCH"))
    y = jax.lax.conv_general_dilated(x_ncl, w1, (1,), "VALID",
                                     dimension_numbers=dn) + b1[None, :, None]
    y = jnp.maximum(y, 0.0)
    dn2 = jax.lax.conv_dimension_numbers(y.shape, w2.shape, ("NCH", "OIH", "NCH"))
    y = jax.lax.conv_general_dilated(y, w2, (1,), "VALID",
                                     dimension_numbers=dn2) + b2[None, :, None]
    return y


if __name__ == "__main__":
    key = jax.random.PRNGKey(0)
    k_x, k_w1, k_b1, k_w2, k_b2 = jax.random.split(key, 5)

    B, in_ch, out_ch, L = 2, 4, 8, 16

    x = jax.random.normal(k_x, (B, in_ch, L), dtype=jnp.float32)
    # Deterministic synthetic parameters (shapes per nn.Conv1d(in, out, 3)).
    w1 = jax.random.normal(k_w1, (out_ch, in_ch, KSIZE), dtype=jnp.float32) * 0.1
    b1 = jax.random.normal(k_b1, (out_ch,), dtype=jnp.float32) * 0.1
    w2 = jax.random.normal(k_w2, (out_ch, out_ch, KSIZE), dtype=jnp.float32) * 0.1
    b2 = jax.random.normal(k_b2, (out_ch,), dtype=jnp.float32) * 0.1

    out = block_forward(x, w1, b1, w2, b2)
    out = jax.block_until_ready(out)

    ref = _reference(x, w1, b1, w2, b2)
    assert out.shape == (B, out_ch, L - 4), out.shape
    assert jnp.allclose(out, ref, atol=1e-5, rtol=1e-5), \
        float(jnp.max(jnp.abs(out - ref)))

    print("KERNEL_OK")
</pallas_src>

<mosaic_0001>
module attributes {stable_mosaic.version = 11 : i64} {
  func.func @_block_kernel(%arg0: i32, %arg1: memref<1x4x16xf32, #tpu.memory_space<vmem>>, %arg2: memref<12x8x1xf32, #tpu.memory_space<vmem>>, %arg3: memref<8x1xf32, #tpu.memory_space<vmem>>, %arg4: memref<24x8x1xf32, #tpu.memory_space<vmem>>, %arg5: memref<8x1xf32, #tpu.memory_space<vmem>>, %arg6: memref<1x8x12xf32, #tpu.memory_space<vmem>>, %arg7: memref<1x8x14xf32, #tpu.memory_space<vmem>>) attributes {dimension_semantics = [#tpu.dimension_semantics<parallel>], iteration_bounds = array<i64: 2>, scalar_prefetch = 0 : i64, scratch_operands = 1 : i64, tpu.core_type = #tpu.core_type<tc>, window_params = [{transform_indices = @transform_0, window_bounds = array<i64: 1, 4, 16>}, {pipeline_mode = #tpu.pipeline_mode<synchronous>, transform_indices = @transform_1, window_bounds = array<i64: 12, 8, 1>}, {pipeline_mode = #tpu.pipeline_mode<synchronous>, transform_indices = @transform_2, window_bounds = array<i64: 8, 1>}, {pipeline_mode = #tpu.pipeline_mode<synchronous>, transform_indices = @transform_3, window_bounds = array<i64: 24, 8, 1>}, {pipeline_mode = #tpu.pipeline_mode<synchronous>, transform_indices = @transform_4, window_bounds = array<i64: 8, 1>}, {transform_indices = @transform_5, window_bounds = array<i64: 1, 8, 12>}]} {
    %c0 = arith.constant 0 : index
    %c0_0 = arith.constant 0 : index
    %c0_1 = arith.constant 0 : index
    %0 = vector.load %arg2[%c0, %c0_0, %c0_1] : memref<12x8x1xf32, #tpu.memory_space<vmem>>, vector<12x8x1xf32>
    %c0_2 = arith.constant 0 : index
    %c0_3 = arith.constant 0 : index
    %c0_4 = arith.constant 0 : index
    %1 = vector.load %arg4[%c0_2, %c0_3, %c0_4] : memref<24x8x1xf32, #tpu.memory_space<vmem>>, vector<24x8x1xf32>
    %c0_5 = arith.constant 0 : index
    %c0_6 = arith.constant 0 : index
    %2 = vector.load %arg3[%c0_5, %c0_6] : memref<8x1xf32, #tpu.memory_space<vmem>>, vector<8x1xf32>
    %c0_7 = arith.constant 0 : index
    %c0_8 = arith.constant 0 : index
    %3 = vector.load %arg5[%c0_7, %c0_8] : memref<8x1xf32, #tpu.memory_space<vmem>>, vector<8x1xf32>
    %c0_9 = arith.constant 0 : index
    %c0_10 = arith.constant 0 : index
    %c0_11 = arith.constant 0 : index
    %4 = vector.load %arg1[%c0_9, %c0_10, %c0_11] : memref<1x4x16xf32, #tpu.memory_space<vmem>>, vector<1x1x14xf32>
    %5 = vector.extract_strided_slice %0 {offsets = [0, 0, 0], sizes = [1, 8, 1], strides = [1, 1, 1]} : vector<12x8x1xf32> to vector<1x8x1xf32>
    %6 = vector.shape_cast %5 : vector<1x8x1xf32> to vector<8x1xf32>
    %7 = vector.shape_cast %6 : vector<8x1xf32> to vector<1x8x1xf32>
    %8 = vector.broadcast %4 : vector<1x1x14xf32> to vector<1x8x14xf32>
    %9 = vector.broadcast %7 : vector<1x8x1xf32> to vector<1x8x14xf32>
    %10 = arith.mulf %8, %9 : vector<1x8x14xf32>
    %c0_12 = arith.constant 0 : index
    %c1 = arith.constant 1 : index
    %c0_13 = arith.constant 0 : index
    %11 = vector.load %arg1[%c0_12, %c1, %c0_13] : memref<1x4x16xf32, #tpu.memory_space<vmem>>, vector<1x1x14xf32>
    %12 = vector.extract_strided_slice %0 {offsets = [1, 0, 0], sizes = [1, 8, 1], strides = [1, 1, 1]} : vector<12x8x1xf32> to vector<1x8x1xf32>
    %13 = vector.shape_cast %12 : vector<1x8x1xf32> to vector<8x1xf32>
    %14 = vector.shape_cast %13 : vector<8x1xf32> to vector<1x8x1xf32>
    %15 = vector.broadcast %11 : vector<1x1x14xf32> to vector<1x8x14xf32>
    %16 = vector.broadcast %14 : vector<1x8x1xf32> to vector<1x8x14xf32>
    %17 = arith.mulf %15, %16 : vector<1x8x14xf32>
    %c0_14 = arith.constant 0 : index
    %c2 = arith.constant 2 : index
    %c0_15 = arith.constant 0 : index
    %18 = vector.load %arg1[%c0_14, %c2, %c0_15] : memref<1x4x16xf32, #tpu.memory_space<vmem>>, vector<1x1x14xf32>
    %19 = vector.extract_strided_slice %0 {offsets = [2, 0, 0], sizes = [1, 8, 1], strides = [1, 1, 1]} : vector<12x8x1xf32> to vector<1x8x1xf32>
    %20 = vector.shape_cast %19 : vector<1x8x1xf32> to vector<8x1xf32>
    %21 = vector.shape_cast %20 : vector<8x1xf32> to vector<1x8x1xf32>
    %22 = vector.broadcast %18 : vector<1x1x14xf32> to vector<1x8x14xf32>
    %23 = vector.broadcast %21 : vector<1x8x1xf32> to vector<1x8x14xf32>
    %24 = arith.mulf %22, %23 : vector<1x8x14xf32>
    %c0_16 = arith.constant 0 : index
    %c3 = arith.constant 3 : index
    %c0_17 = arith.constant 0 : index
    %25 = vector.load %arg1[%c0_16, %c3, %c0_17] : memref<1x4x16xf32, #tpu.memory_space<vmem>>, vector<1x1x14xf32>
    %26 = vector.extract_strided_slice %0 {offsets = [3, 0, 0], sizes = [1, 8, 1], strides = [1, 1, 1]} : vector<12x8x1xf32> to vector<1x8x1xf32>
    %27 = vector.shape_cast %26 : vector<1x8x1xf32> to vector<8x1xf32>
    %28 = vector.shape_cast %27 : vector<8x1xf32> to vector<1x8x1xf32>
    %29 = vector.broadcast %25 : vector<1x1x14xf32> to vector<1x8x14xf32>
    %30 = vector.broadcast %28 : vector<1x8x1xf32> to vector<1x8x14xf32>
    %31 = arith.mulf %29, %30 : vector<1x8x14xf32>
    %c0_18 = arith.constant 0 : index
    %c0_19 = arith.constant 0 : index
    %c1_20 = arith.constant 1 : index
    %32 = vector.load %arg1[%c0_18, %c0_19, %c1_20] : memref<1x4x16xf32, #tpu.memory_space<vmem>>, vector<1x1x14xf32>
    %33 = vector.extract_strided_slice %0 {offsets = [4, 0, 0], sizes = [1, 8, 1], strides = [1, 1, 1]} : vector<12x8x1xf32> to vector<1x8x1xf32>
    %34 = vector.shape_cast %33 : vector<1x8x1xf32> to vector<8x1xf32>
    %35 = vector.shape_cast %34 : vector<8x1xf32> to vector<1x8x1xf32>
    %36 = vector.broadcast %32 : vector<1x1x14xf32> to vector<1x8x14xf32>
    %37 = vector.broadcast %35 : vector<1x8x1xf32> to vector<1x8x14xf32>
    %38 = arith.mulf %36, %37 : vector<1x8x14xf32>
    %39 = arith.addf %10, %38 : vector<1x8x14xf32>
    %c0_21 = arith.constant 0 : index
    %c1_22 = arith.constant 1 : index
    %c1_23 = arith.constant 1 : index
    %40 = vector.load %arg1[%c0_21, %c1_22, %c1_23] : memref<1x4x16xf32, #tpu.memory_space<vmem>>, vector<1x1x14xf32>
    %41 = vector.extract_strided_slice %0 {offsets = [5, 0, 0], sizes = [1, 8, 1], strides = [1, 1, 1]} : vector<12x8x1xf32> to vector<1x8x1xf32>
    %42 = vector.shape_cast %41 : vector<1x8x1xf32> to vector<8x1xf32>
    %43 = vector.shape_cast %42 : vector<8x1xf32> to vector<1x8x1xf32>
    %44 = vector.broadcast %40 : vector<1x1x14xf32> to vector<1x8x14xf32>
    %45 = vector.broadcast %43 : vector<1x8x1xf32> to vector<1x8x14xf32>
    %46 = arith.mulf %44, %45 : vector<1x8x14xf32>
    %47 = arith.addf %17, %46 : vector<1x8x14xf32>
    %c0_24 = arith.constant 0 : index
    %c2_25 = arith.constant 2 : index
    %c1_26 = arith.constant 1 : index
    %48 = vector.load %arg1[%c0_24, %c2_25, %c1_26] : memref<1x4x16xf32, #tpu.memory_space<vmem>>, vector<1x1x14xf32>
    %49 = vector.extract_strided_slice %0 {offsets = [6, 0, 0], sizes = [1, 8, 1], strides = [1, 1, 1]} : vector<12x8x1xf32> to vector<1x8x1xf32>
    %50 = vector.shape_cast %49 : vector<1x8x1xf32> to vector<8x1xf32>
    %51 = vector.shape_cast %50 : vector<8x1xf32> to vector<1x8x1xf32>
    %52 = vector.broadcast %48 : vector<1x1x14xf32> to vector<1x8x14xf32>
    %53 = vector.broadcast %51 : vector<1x8x1xf32> to vector<1x8x14xf32>
    %54 = arith.mulf %52, %53 : vector<1x8x14xf32>
    %55 = arith.addf %24, %54 : vector<1x8x14xf32>
    %c0_27 = arith.constant 0 : index
    %c3_28 = arith.constant 3 : index
    %c1_29 = arith.constant 1 : index
    %56 = vector.load %arg1[%c0_27, %c3_28, %c1_29] : memref<1x4x16xf32, #tpu.memory_space<vmem>>, vector<1x1x14xf32>
    %57 = vector.extract_strided_slice %0 {offsets = [7, 0, 0], sizes = [1, 8, 1], strides = [1, 1, 1]} : vector<12x8x1xf32> to vector<1x8x1xf32>
    %58 = vector.shape_cast %57 : vector<1x8x1xf32> to vector<8x1xf32>
    %59 = vector.shape_cast %58 : vector<8x1xf32> to vector<1x8x1xf32>
    %60 = vector.broadcast %56 : vector<1x1x14xf32> to vector<1x8x14xf32>
    %61 = vector.broadcast %59 : vector<1x8x1xf32> to vector<1x8x14xf32>
    %62 = arith.mulf %60, %61 : vector<1x8x14xf32>
    %63 = arith.addf %31, %62 : vector<1x8x14xf32>
    %c0_30 = arith.constant 0 : index
    %c0_31 = arith.constant 0 : index
    %c2_32 = arith.constant 2 : index
    %64 = vector.load %arg1[%c0_30, %c0_31, %c2_32] : memref<1x4x16xf32, #tpu.memory_space<vmem>>, vector<1x1x14xf32>
    %65 = vector.extract_strided_slice %0 {offsets = [8, 0, 0], sizes = [1, 8, 1], strides = [1, 1, 1]} : vector<12x8x1xf32> to vector<1x8x1xf32>
    %66 = vector.shape_cast %65 : vector<1x8x1xf32> to vector<8x1xf32>
    %67 = vector.shape_cast %66 : vector<8x1xf32> to vector<1x8x1xf32>
    %68 = vector.broadcast %64 : vector<1x1x14xf32> to vector<1x8x14xf32>
    %69 = vector.broadcast %67 : vector<1x8x1xf32> to vector<1x8x14xf32>
    %70 = arith.mulf %68, %69 : vector<1x8x14xf32>
    %71 = arith.addf %39, %70 : vector<1x8x14xf32>
    %c0_33 = arith.constant 0 : index
    %c1_34 = arith.constant 1 : index
    %c2_35 = arith.constant 2 : index
    %72 = vector.load %arg1[%c0_33, %c1_34, %c2_35] : memref<1x4x16xf32, #tpu.memory_space<vmem>>, vector<1x1x14xf32>
    %73 = vector.extract_strided_slice %0 {offsets = [9, 0, 0], sizes = [1, 8, 1], strides = [1, 1, 1]} : vector<12x8x1xf32> to vector<1x8x1xf32>
    %74 = vector.shape_cast %73 : vector<1x8x1xf32> to vector<8x1xf32>
    %75 = vector.shape_cast %74 : vector<8x1xf32> to vector<1x8x1xf32>
    %76 = vector.broadcast %72 : vector<1x1x14xf32> to vector<1x8x14xf32>
    %77 = vector.broadcast %75 : vector<1x8x1xf32> to vector<1x8x14xf32>
    %78 = arith.mulf %76, %77 : vector<1x8x14xf32>
    %79 = arith.addf %47, %78 : vector<1x8x14xf32>
    %c0_36 = arith.constant 0 : index
    %c2_37 = arith.constant 2 : index
    %c2_38 = arith.constant 2 : index
    %80 = vector.load %arg1[%c0_36, %c2_37, %c2_38] : memref<1x4x16xf32, #tpu.memory_space<vmem>>, vector<1x1x14xf32>
    %81 = vector.extract_strided_slice %0 {offsets = [10, 0, 0], sizes = [1, 8, 1], strides = [1, 1, 1]} : vector<12x8x1xf32> to vector<1x8x1xf32>
    %82 = vector.shape_cast %81 : vector<1x8x1xf32> to vector<8x1xf32>
    %83 = vector.shape_cast %82 : vector<8x1xf32> to vector<1x8x1xf32>
    %84 = vector.broadcast %80 : vector<1x1x14xf32> to vector<1x8x14xf32>
    %85 = vector.broadcast %83 : vector<1x8x1xf32> to vector<1x8x14xf32>
    %86 = arith.mulf %84, %85 : vector<1x8x14xf32>
    %87 = arith.addf %55, %86 : vector<1x8x14xf32>
    %c0_39 = arith.constant 0 : index
    %c3_40 = arith.constant 3 : index
    %c2_41 = arith.constant 2 : index
    %88 = vector.load %arg1[%c0_39, %c3_40, %c2_41] : memref<1x4x16xf32, #tpu.memory_space<vmem>>, vector<1x1x14xf32>
    %89 = vector.extract_strided_slice %0 {offsets = [11, 0, 0], sizes = [1, 8, 1], strides = [1, 1, 1]} : vector<12x8x1xf32> to vector<1x8x1xf32>
    %90 = vector.shape_cast %89 : vector<1x8x1xf32> to vector<8x1xf32>
    %91 = vector.shape_cast %90 : vector<8x1xf32> to vector<1x8x1xf32>
    %92 = vector.broadcast %88 : vector<1x1x14xf32> to vector<1x8x14xf32>
    %93 = vector.broadcast %91 : vector<1x8x1xf32> to vector<1x8x14xf32>
    %94 = arith.mulf %92, %93 : vector<1x8x14xf32>
    %95 = arith.addf %63, %94 : vector<1x8x14xf32>
    %96 = arith.addf %71, %79 : vector<1x8x14xf32>
    %97 = arith.addf %87, %95 : vector<1x8x14xf32>
    %98 = arith.addf %96, %97 : vector<1x8x14xf32>
    %99 = vector.shape_cast %2 : vector<8x1xf32> to vector<1x8x1xf32>
    %100 = vector.broadcast %99 : vector<1x8x1xf32> to vector<1x8x14xf32>
    %101 = arith.addf %98, %100 : vector<1x8x14xf32>
    %cst = arith.constant 0.000000e+00 : f32
    %102 = vector.broadcast %cst : f32 to vector<1x8x14xf32>
    %103 = arith.maximumf %101, %102 : vector<1x8x14xf32>
    %c0_42 = arith.constant 0 : index
    %c0_43 = arith.constant 0 : index
    %c0_44 = arith.constant 0 : index
    %104 = vector.load %arg7[%c0_42, %c0_43, %c0_44] : memref<1x8x14xf32, #tpu.memory_space<vmem>>, vector<1x8x14xf32>
    tpu.vector_store %arg7[%c0_42, %c0_43, %c0_44], %103 {strides = array<i32>} : memref<1x8x14xf32, #tpu.memory_space<vmem>>, vector<1x8x14xf32>,
    %c0_45 = arith.constant 0 : index
    %c0_46 = arith.constant 0 : index
    %c0_47 = arith.constant 0 : index
    %105 = vector.load %arg7[%c0_45, %c0_46, %c0_47] : memref<1x8x14xf32, #tpu.memory_space<vmem>>, vector<1x1x12xf32>
    %106 = vector.extract_strided_slice %1 {offsets = [0, 0, 0], sizes = [1, 8, 1], strides = [1, 1, 1]} : vector<24x8x1xf32> to vector<1x8x1xf32>
    %107 = vector.shape_cast %106 : vector<1x8x1xf32> to vector<8x1xf32>
    %108 = vector.shape_cast %107 : vector<8x1xf32> to vector<1x8x1xf32>
    %109 = vector.broadcast %105 : vector<1x1x12xf32> to vector<1x8x12xf32>
    %110 = vector.broadcast %108 : vector<1x8x1xf32> to vector<1x8x12xf32>
    %111 = arith.mulf %109, %110 : vector<1x8x12xf32>
    %c0_48 = arith.constant 0 : index
    %c1_49 = arith.constant 1 : index
    %c0_50 = arith.constant 0 : index
    %112 = vector.load %arg7[%c0_48, %c1_49, %c0_50] : memref<1x8x14xf32, #tpu.memory_space<vmem>>, vector<1x1x12xf32>
    %113 = vector.extract_strided_slice %1 {offsets = [1, 0, 0], sizes = [1, 8, 1], strides = [1, 1, 1]} : vector<24x8x1xf32> to vector<1x8x1xf32>
    %114 = vector.shape_cast %113 : vector<1x8x1xf32> to vector<8x1xf32>
    %115 = vector.shape_cast %114 : vector<8x1xf32> to vector<1x8x1xf32>
    %116 = vector.broadcast %112 : vector<1x1x12xf32> to vector<1x8x12xf32>
    %117 = vector.broadcast %115 : vector<1x8x1xf32> to vector<1x8x12xf32>
    %118 = arith.mulf %116, %117 : vector<1x8x12xf32>
    %c0_51 = arith.constant 0 : index
    %c2_52 = arith.constant 2 : index
    %c0_53 = arith.constant 0 : index
    %119 = vector.load %arg7[%c0_51, %c2_52, %c0_53] : memref<1x8x14xf32, #tpu.memory_space<vmem>>, vector<1x1x12xf32>
    %120 = vector.extract_strided_slice %1 {offsets = [2, 0, 0], sizes = [1, 8, 1], strides = [1, 1, 1]} : vector<24x8x1xf32> to vector<1x8x1xf32>
    %121 = vector.shape_cast %120 : vector<1x8x1xf32> to vector<8x1xf32>
    %122 = vector.shape_cast %121 : vector<8x1xf32> to vector<1x8x1xf32>
    %123 = vector.broadcast %119 : vector<1x1x12xf32> to vector<1x8x12xf32>
    %124 = vector.broadcast %122 : vector<1x8x1xf32> to vector<1x8x12xf32>
    %125 = arith.mulf %123, %124 : vector<1x8x12xf32>
    %c0_54 = arith.constant 0 : index
    %c3_55 = arith.constant 3 : index
    %c0_56 = arith.constant 0 : index
    %126 = vector.load %arg7[%c0_54, %c3_55, %c0_56] : memref<1x8x14xf32, #tpu.memory_space<vmem>>, vector<1x1x12xf32>
    %127 = vector.extract_strided_slice %1 {offsets = [3, 0, 0], sizes = [1, 8, 1], strides = [1, 1, 1]} : vector<24x8x1xf32> to vector<1x8x1xf32>
    %128 = vector.shape_cast %127 : vector<1x8x1xf32> to vector<8x1xf32>
    %129 = vector.shape_cast %128 : vector<8x1xf32> to vector<1x8x1xf32>
    %130 = vector.broadcast %126 : vector<1x1x12xf32> to vector<1x8x12xf32>
    %131 = vector.broadcast %129 : vector<1x8x1xf32> to vector<1x8x12xf32>
    %132 = arith.mulf %130, %131 : vector<1x8x12xf32>
    %c0_57 = arith.constant 0 : index
    %c4 = arith.constant 4 : index
    %c0_58 = arith.constant 0 : index
    %133 = vector.load %arg7[%c0_57, %c4, %c0_58] : memref<1x8x14xf32, #tpu.memory_space<vmem>>, vector<1x1x12xf32>
    %134 = vector.extract_strided_slice %1 {offsets = [4, 0, 0], sizes = [1, 8, 1], strides = [1, 1, 1]} : vector<24x8x1xf32> to vector<1x8x1xf32>
    %135 = vector.shape_cast %134 : vector<1x8x1xf32> to vector<8x1xf32>
    %136 = vector.shape_cast %135 : vector<8x1xf32> to vector<1x8x1xf32>
    %137 = vector.broadcast %133 : vector<1x1x12xf32> to vector<1x8x12xf32>
    %138 = vector.broadcast %136 : vector<1x8x1xf32> to vector<1x8x12xf32>
    %139 = arith.mulf %137, %138 : vector<1x8x12xf32>
    %140 = arith.addf %111, %139 : vector<1x8x12xf32>
    %c0_59 = arith.constant 0 : index
    %c5 = arith.constant 5 : index
    %c0_60 = arith.constant 0 : index
    %141 = vector.load %arg7[%c0_59, %c5, %c0_60] : memref<1x8x14xf32, #tpu.memory_space<vmem>>, vector<1x1x12xf32>
    %142 = vector.extract_strided_slice %1 {offsets = [5, 0, 0], sizes = [1, 8, 1], strides = [1, 1, 1]} : vector<24x8x1xf32> to vector<1x8x1xf32>
    %143 = vector.shape_cast %142 : vector<1x8x1xf32> to vector<8x1xf32>
    %144 = vector.shape_cast %143 : vector<8x1xf32> to vector<1x8x1xf32>
    %145 = vector.broadcast %141 : vector<1x1x12xf32> to vector<1x8x12xf32>
    %146 = vector.broadcast %144 : vector<1x8x1xf32> to vector<1x8x12xf32>
    %147 = arith.mulf %145, %146 : vector<1x8x12xf32>
    %148 = arith.addf %118, %147 : vector<1x8x12xf32>
    %c0_61 = arith.constant 0 : index
    %c6 = arith.constant 6 : index
    %c0_62 = arith.constant 0 : index
    %149 = vector.load %arg7[%c0_61, %c6, %c0_62] : memref<1x8x14xf32, #tpu.memory_space<vmem>>, vector<1x1x12xf32>
    %150 = vector.extract_strided_slice %1 {offsets = [6, 0, 0], sizes = [1, 8, 1], strides = [1, 1, 1]} : vector<24x8x1xf32> to vector<1x8x1xf32>
    %151 = vector.shape_cast %150 : vector<1x8x1xf32> to vector<8x1xf32>
    %152 = vector.shape_cast %151 : vector<8x1xf32> to vector<1x8x1xf32>
    %153 = vector.broadcast %149 : vector<1x1x12xf32> to vector<1x8x12xf32>
    %154 = vector.broadcast %152 : vector<1x8x1xf32> to vector<1x8x12xf32>
    %155 = arith.mulf %153, %154 : vector<1x8x12xf32>
    %156 = arith.addf %125, %155 : vector<1x8x12xf32>
    %c0_63 = arith.constant 0 : index
    %c7 = arith.constant 7 : index
    %c0_64 = arith.constant 0 : index
    %157 = vector.load %arg7[%c0_63, %c7, %c0_64] : memref<1x8x14xf32, #tpu.memory_space<vmem>>, vector<1x1x12xf32>
    %158 = vector.extract_strided_slice %1 {offsets = [7, 0, 0], sizes = [1, 8, 1], strides = [1, 1, 1]} : vector<24x8x1xf32> to vector<1x8x1xf32>
    %159 = vector.shape_cast %158 : vector<1x8x1xf32> to vector<8x1xf32>
    %160 = vector.shape_cast %159 : vector<8x1xf32> to vector<1x8x1xf32>
    %161 = vector.broadcast %157 : vector<1x1x12xf32> to vector<1x8x12xf32>
    %162 = vector.broadcast %160 : vector<1x8x1xf32> to vector<1x8x12xf32>
    %163 = arith.mulf %161, %162 : vector<1x8x12xf32>
    %164 = arith.addf %132, %163 : vector<1x8x12xf32>
    %c0_65 = arith.constant 0 : index
    %c0_66 = arith.constant 0 : index
    %c1_67 = arith.constant 1 : index
    %165 = vector.load %arg7[%c0_65, %c0_66, %c1_67] : memref<1x8x14xf32, #tpu.memory_space<vmem>>, vector<1x1x12xf32>
    %166 = vector.extract_strided_slice %1 {offsets = [8, 0, 0], sizes = [1, 8, 1], strides = [1, 1, 1]} : vector<24x8x1xf32> to vector<1x8x1xf32>
    %167 = vector.shape_cast %166 : vector<1x8x1xf32> to vector<8x1xf32>
    %168 = vector.shape_cast %167 : vector<8x1xf32> to vector<1x8x1xf32>
    %169 = vector.broadcast %165 : vector<1x1x12xf32> to vector<1x8x12xf32>
    %170 = vector.broadcast %168 : vector<1x8x1xf32> to vector<1x8x12xf32>
    %171 = arith.mulf %169, %170 : vector<1x8x12xf32>
    %172 = arith.addf %140, %171 : vector<1x8x12xf32>
    %c0_68 = arith.constant 0 : index
    %c1_69 = arith.constant 1 : index
    %c1_70 = arith.constant 1 : index
    %173 = vector.load %arg7[%c0_68, %c1_69, %c1_70] : memref<1x8x14xf32, #tpu.memory_space<vmem>>, vector<1x1x12xf32>
    %174 = vector.extract_strided_slice %1 {offsets = [9, 0, 0], sizes = [1, 8, 1], strides = [1, 1, 1]} : vector<24x8x1xf32> to vector<1x8x1xf32>
    %175 = vector.shape_cast %174 : vector<1x8x1xf32> to vector<8x1xf32>
    %176 = vector.shape_cast %175 : vector<8x1xf32> to vector<1x8x1xf32>
    %177 = vector.broadcast %173 : vector<1x1x12xf32> to vector<1x8x12xf32>
    %178 = vector.broadcast %176 : vector<1x8x1xf32> to vector<1x8x12xf32>
    %179 = arith.mulf %177, %178 : vector<1x8x12xf32>
    %180 = arith.addf %148, %179 : vector<1x8x12xf32>
    %c0_71 = arith.constant 0 : index
    %c2_72 = arith.constant 2 : index
    %c1_73 = arith.constant 1 : index
    %181 = vector.load %arg7[%c0_71, %c2_72, %c1_73] : memref<1x8x14xf32, #tpu.memory_space<vmem>>, vector<1x1x12xf32>
    %182 = vector.extract_strided_slice %1 {offsets = [10, 0, 0], sizes = [1, 8, 1], strides = [1, 1, 1]} : vector<24x8x1xf32> to vector<1x8x1xf32>
    %183 = vector.shape_cast %182 : vector<1x8x1xf32> to vector<8x1xf32>
    %184 = vector.shape_cast %183 : vector<8x1xf32> to vector<1x8x1xf32>
    %185 = vector.broadcast %181 : vector<1x1x12xf32> to vector<1x8x12xf32>
    %186 = vector.broadcast %184 : vector<1x8x1xf32> to vector<1x8x12xf32>
    %187 = arith.mulf %185, %186 : vector<1x8x12xf32>
    %188 = arith.addf %156, %187 : vector<1x8x12xf32>
    %c0_74 = arith.constant 0 : index
    %c3_75 = arith.constant 3 : index
    %c1_76 = arith.constant 1 : index
    %189 = vector.load %arg7[%c0_74, %c3_75, %c1_76] : memref<1x8x14xf32, #tpu.memory_space<vmem>>, vector<1x1x12xf32>
    %190 = vector.extract_strided_slice %1 {offsets = [11, 0, 0], sizes = [1, 8, 1], strides = [1, 1, 1]} : vector<24x8x1xf32> to vector<1x8x1xf32>
    %191 = vector.shape_cast %190 : vector<1x8x1xf32> to vector<8x1xf32>
    %192 = vector.shape_cast %191 : vector<8x1xf32> to vector<1x8x1xf32>
    %193 = vector.broadcast %189 : vector<1x1x12xf32> to vector<1x8x12xf32>
    %194 = vector.broadcast %192 : vector<1x8x1xf32> to vector<1x8x12xf32>
    %195 = arith.mulf %193, %194 : vector<1x8x12xf32>
    %196 = arith.addf %164, %195 : vector<1x8x12xf32>
    %c0_77 = arith.constant 0 : index
    %c4_78 = arith.constant 4 : index
    %c1_79 = arith.constant 1 : index
    %197 = vector.load %arg7[%c0_77, %c4_78, %c1_79] : memref<1x8x14xf32, #tpu.memory_space<vmem>>, vector<1x1x12xf32>
    %198 = vector.extract_strided_slice %1 {offsets = [12, 0, 0], sizes = [1, 8, 1], strides = [1, 1, 1]} : vector<24x8x1xf32> to vector<1x8x1xf32>
    %199 = vector.shape_cast %198 : vector<1x8x1xf32> to vector<8x1xf32>
    %200 = vector.shape_cast %199 : vector<8x1xf32> to vector<1x8x1xf32>
    %201 = vector.broadcast %197 : vector<1x1x12xf32> to vector<1x8x12xf32>
    %202 = vector.broadcast %200 : vector<1x8x1xf32> to vector<1x8x12xf32>
    %203 = arith.mulf %201, %202 : vector<1x8x12xf32>
    %204 = arith.addf %172, %203 : vector<1x8x12xf32>
    %c0_80 = arith.constant 0 : index
    %c5_81 = arith.constant 5 : index
    %c1_82 = arith.constant 1 : index
    %205 = vector.load %arg7[%c0_80, %c5_81, %c1_82] : memref<1x8x14xf32, #tpu.memory_space<vmem>>, vector<1x1x12xf32>
    %206 = vector.extract_strided_slice %1 {offsets = [13, 0, 0], sizes = [1, 8, 1], strides = [1, 1, 1]} : vector<24x8x1xf32> to vector<1x8x1xf32>
    %207 = vector.shape_cast %206 : vector<1x8x1xf32> to vector<8x1xf32>
    %208 = vector.shape_cast %207 : vector<8x1xf32> to vector<1x8x1xf32>
    %209 = vector.broadcast %205 : vector<1x1x12xf32> to vector<1x8x12xf32>
    %210 = vector.broadcast %208 : vector<1x8x1xf32> to vector<1x8x12xf32>
    %211 = arith.mulf %209, %210 : vector<1x8x12xf32>
    %212 = arith.addf %180, %211 : vector<1x8x12xf32>
    %c0_83 = arith.constant 0 : index
    %c6_84 = arith.constant 6 : index
    %c1_85 = arith.constant 1 : index
    %213 = vector.load %arg7[%c0_83, %c6_84, %c1_85] : memref<1x8x14xf32, #tpu.memory_space<vmem>>, vector<1x1x12xf32>
    %214 = vector.extract_strided_slice %1 {offsets = [14, 0, 0], sizes = [1, 8, 1], strides = [1, 1, 1]} : vector<24x8x1xf32> to vector<1x8x1xf32>
    %215 = vector.shape_cast %214 : vector<1x8x1xf32> to vector<8x1xf32>
    %216 = vector.shape_cast %215 : vector<8x1xf32> to vector<1x8x1xf32>
    %217 = vector.broadcast %213 : vector<1x1x12xf32> to vector<1x8x12xf32>
    %218 = vector.broadcast %216 : vector<1x8x1xf32> to vector<1x8x12xf32>
    %219 = arith.mulf %217, %218 : vector<1x8x12xf32>
    %220 = arith.addf %188, %219 : vector<1x8x12xf32>
    %c0_86 = arith.constant 0 : index
    %c7_87 = arith.constant 7 : index
    %c1_88 = arith.constant 1 : index
    %221 = vector.load %arg7[%c0_86, %c7_87, %c1_88] : memref<1x8x14xf32, #tpu.memory_space<vmem>>, vector<1x1x12xf32>
    %222 = vector.extract_strided_slice %1 {offsets = [15, 0, 0], sizes = [1, 8, 1], strides = [1, 1, 1]} : vector<24x8x1xf32> to vector<1x8x1xf32>
    %223 = vector.shape_cast %222 : vector<1x8x1xf32> to vector<8x1xf32>
    %224 = vector.shape_cast %223 : vector<8x1xf32> to vector<1x8x1xf32>
    %225 = vector.broadcast %221 : vector<1x1x12xf32> to vector<1x8x12xf32>
    %226 = vector.broadcast %224 : vector<1x8x1xf32> to vector<1x8x12xf32>
    %227 = arith.mulf %225, %226 : vector<1x8x12xf32>
    %228 = arith.addf %196, %227 : vector<1x8x12xf32>
    %c0_89 = arith.constant 0 : index
    %c0_90 = arith.constant 0 : index
    %c2_91 = arith.constant 2 : index
    %229 = vector.load %arg7[%c0_89, %c0_90, %c2_91] : memref<1x8x14xf32, #tpu.memory_space<vmem>>, vector<1x1x12xf32>
    %230 = vector.extract_strided_slice %1 {offsets = [16, 0, 0], sizes = [1, 8, 1], strides = [1, 1, 1]} : vector<24x8x1xf32> to vector<1x8x1xf32>
    %231 = vector.shape_cast %230 : vector<1x8x1xf32> to vector<8x1xf32>
    %232 = vector.shape_cast %231 : vector<8x1xf32> to vector<1x8x1xf32>
    %233 = vector.broadcast %229 : vector<1x1x12xf32> to vector<1x8x12xf32>
    %234 = vector.broadcast %232 : vector<1x8x1xf32> to vector<1x8x12xf32>
    %235 = arith.mulf %233, %234 : vector<1x8x12xf32>
    %236 = arith.addf %204, %235 : vector<1x8x12xf32>
    %c0_92 = arith.constant 0 : index
    %c1_93 = arith.constant 1 : index
    %c2_94 = arith.constant 2 : index
    %237 = vector.load %arg7[%c0_92, %c1_93, %c2_94] : memref<1x8x14xf32, #tpu.memory_space<vmem>>, vector<1x1x12xf32>
    %238 = vector.extract_strided_slice %1 {offsets = [17, 0, 0], sizes = [1, 8, 1], strides = [1, 1, 1]} : vector<24x8x1xf32> to vector<1x8x1xf32>
    %239 = vector.shape_cast %238 : vector<1x8x1xf32> to vector<8x1xf32>
    %240 = vector.shape_cast %239 : vector<8x1xf32> to vector<1x8x1xf32>
    %241 = vector.broadcast %237 : vector<1x1x12xf32> to vector<1x8x12xf32>
    %242 = vector.broadcast %240 : vector<1x8x1xf32> to vector<1x8x12xf32>
    %243 = arith.mulf %241, %242 : vector<1x8x12xf32>
    %244 = arith.addf %212, %243 : vector<1x8x12xf32>
    %c0_95 = arith.constant 0 : index
    %c2_96 = arith.constant 2 : index
    %c2_97 = arith.constant 2 : index
    %245 = vector.load %arg7[%c0_95, %c2_96, %c2_97] : memref<1x8x14xf32, #tpu.memory_space<vmem>>, vector<1x1x12xf32>
    %246 = vector.extract_strided_slice %1 {offsets = [18, 0, 0], sizes = [1, 8, 1], strides = [1, 1, 1]} : vector<24x8x1xf32> to vector<1x8x1xf32>
    %247 = vector.shape_cast %246 : vector<1x8x1xf32> to vector<8x1xf32>
    %248 = vector.shape_cast %247 : vector<8x1xf32> to vector<1x8x1xf32>
    %249 = vector.broadcast %245 : vector<1x1x12xf32> to vector<1x8x12xf32>
    %250 = vector.broadcast %248 : vector<1x8x1xf32> to vector<1x8x12xf32>
    %251 = arith.mulf %249, %250 : vector<1x8x12xf32>
    %252 = arith.addf %220, %251 : vector<1x8x12xf32>
    %c0_98 = arith.constant 0 : index
    %c3_99 = arith.constant 3 : index
    %c2_100 = arith.constant 2 : index
    %253 = vector.load %arg7[%c0_98, %c3_99, %c2_100] : memref<1x8x14xf32, #tpu.memory_space<vmem>>, vector<1x1x12xf32>
    %254 = vector.extract_strided_slice %1 {offsets = [19, 0, 0], sizes = [1, 8, 1], strides = [1, 1, 1]} : vector<24x8x1xf32> to vector<1x8x1xf32>
    %255 = vector.shape_cast %254 : vector<1x8x1xf32> to vector<8x1xf32>
    %256 = vector.shape_cast %255 : vector<8x1xf32> to vector<1x8x1xf32>
    %257 = vector.broadcast %253 : vector<1x1x12xf32> to vector<1x8x12xf32>
    %258 = vector.broadcast %256 : vector<1x8x1xf32> to vector<1x8x12xf32>
    %259 = arith.mulf %257, %258 : vector<1x8x12xf32>
    %260 = arith.addf %228, %259 : vector<1x8x12xf32>
    %c0_101 = arith.constant 0 : index
    %c4_102 = arith.constant 4 : index
    %c2_103 = arith.constant 2 : index
    %261 = vector.load %arg7[%c0_101, %c4_102, %c2_103] : memref<1x8x14xf32, #tpu.memory_space<vmem>>, vector<1x1x12xf32>
    %262 = vector.extract_strided_slice %1 {offsets = [20, 0, 0], sizes = [1, 8, 1], strides = [1, 1, 1]} : vector<24x8x1xf32> to vector<1x8x1xf32>
    %263 = vector.shape_cast %262 : vector<1x8x1xf32> to vector<8x1xf32>
    %264 = vector.shape_cast %263 : vector<8x1xf32> to vector<1x8x1xf32>
    %265 = vector.broadcast %261 : vector<1x1x12xf32> to vector<1x8x12xf32>
    %266 = vector.broadcast %264 : vector<1x8x1xf32> to vector<1x8x12xf32>
    %267 = arith.mulf %265, %266 : vector<1x8x12xf32>
    %268 = arith.addf %236, %267 : vector<1x8x12xf32>
    %c0_104 = arith.constant 0 : index
    %c5_105 = arith.constant 5 : index
    %c2_106 = arith.constant 2 : index
    %269 = vector.load %arg7[%c0_104, %c5_105, %c2_106] : memref<1x8x14xf32, #tpu.memory_space<vmem>>, vector<1x1x12xf32>
    %270 = vector.extract_strided_slice %1 {offsets = [21, 0, 0], sizes = [1, 8, 1], strides = [1, 1, 1]} : vector<24x8x1xf32> to vector<1x8x1xf32>
    %271 = vector.shape_cast %270 : vector<1x8x1xf32> to vector<8x1xf32>
    %272 = vector.shape_cast %271 : vector<8x1xf32> to vector<1x8x1xf32>
    %273 = vector.broadcast %269 : vector<1x1x12xf32> to vector<1x8x12xf32>
    %274 = vector.broadcast %272 : vector<1x8x1xf32> to vector<1x8x12xf32>
    %275 = arith.mulf %273, %274 : vector<1x8x12xf32>
    %276 = arith.addf %244, %275 : vector<1x8x12xf32>
    %c0_107 = arith.constant 0 : index
    %c6_108 = arith.constant 6 : index
    %c2_109 = arith.constant 2 : index
    %277 = vector.load %arg7[%c0_107, %c6_108, %c2_109] : memref<1x8x14xf32, #tpu.memory_space<vmem>>, vector<1x1x12xf32>
    %278 = vector.extract_strided_slice %1 {offsets = [22, 0, 0], sizes = [1, 8, 1], strides = [1, 1, 1]} : vector<24x8x1xf32> to vector<1x8x1xf32>
    %279 = vector.shape_cast %278 : vector<1x8x1xf32> to vector<8x1xf32>
    %280 = vector.shape_cast %279 : vector<8x1xf32> to vector<1x8x1xf32>
    %281 = vector.broadcast %277 : vector<1x1x12xf32> to vector<1x8x12xf32>
    %282 = vector.broadcast %280 : vector<1x8x1xf32> to vector<1x8x12xf32>
    %283 = arith.mulf %281, %282 : vector<1x8x12xf32>
    %284 = arith.addf %252, %283 : vector<1x8x12xf32>
    %c0_110 = arith.constant 0 : index
    %c7_111 = arith.constant 7 : index
    %c2_112 = arith.constant 2 : index
    %285 = vector.load %arg7[%c0_110, %c7_111, %c2_112] : memref<1x8x14xf32, #tpu.memory_space<vmem>>, vector<1x1x12xf32>
    %286 = vector.extract_strided_slice %1 {offsets = [23, 0, 0], sizes = [1, 8, 1], strides = [1, 1, 1]} : vector<24x8x1xf32> to vector<1x8x1xf32>
    %287 = vector.shape_cast %286 : vector<1x8x1xf32> to vector<8x1xf32>
    %288 = vector.shape_cast %287 : vector<8x1xf32> to vector<1x8x1xf32>
    %289 = vector.broadcast %285 : vector<1x1x12xf32> to vector<1x8x12xf32>
    %290 = vector.broadcast %288 : vector<1x8x1xf32> to vector<1x8x12xf32>
    %291 = arith.mulf %289, %290 : vector<1x8x12xf32>
    %292 = arith.addf %260, %291 : vector<1x8x12xf32>
    %293 = arith.addf %268, %276 : vector<1x8x12xf32>
    %294 = arith.addf %284, %292 : vector<1x8x12xf32>
    %295 = arith.addf %293, %294 : vector<1x8x12xf32>
    %296 = vector.shape_cast %3 : vector<8x1xf32> to vector<1x8x1xf32>
    %297 = vector.broadcast %296 : vector<1x8x1xf32> to vector<1x8x12xf32>
    %298 = arith.addf %295, %297 : vector<1x8x12xf32>
    %c0_113 = arith.constant 0 : index
    %c0_114 = arith.constant 0 : index
    %c0_115 = arith.constant 0 : index
    %299 = vector.load %arg6[%c0_113, %c0_114, %c0_115] : memref<1x8x12xf32, #tpu.memory_space<vmem>>, vector<1x8x12xf32>
    tpu.vector_store %arg6[%c0_113, %c0_114, %c0_115], %298 {strides = array<i32>} : memref<1x8x12xf32, #tpu.memory_space<vmem>>, vector<1x8x12xf32>,
    return
  }
  func.func @transform_0(%arg0: i32) -> (i32, i32, i32) {
    %c0_i32 = arith.constant 0 : i32
    %c0_i32_0 = arith.constant 0 : i32
    %c0_i32_1 = arith.constant 0 : i32
    return %arg0, %c0_i32, %c0_i32_0 : i32, i32, i32
  }
  func.func @transform_1(%arg0: i32) -> (i32, i32, i32) {
    %c0_i32 = arith.constant 0 : i32
    %c0_i32_0 = arith.constant 0 : i32
    %c0_i32_1 = arith.constant 0 : i32
    %c0_i32_2 = arith.constant 0 : i32
    return %c0_i32, %c0_i32_0, %c0_i32_1 : i32, i32, i32
  }
  func.func @transform_2(%arg0: i32) -> (i32, i32) {
    %c0_i32 = arith.constant 0 : i32
    %c0_i32_0 = arith.constant 0 : i32
    %c0_i32_1 = arith.constant 0 : i32
    return %c0_i32, %c0_i32_0 : i32, i32
  }
  func.func @transform_3(%arg0: i32) -> (i32, i32, i32) {
    %c0_i32 = arith.constant 0 : i32
    %c0_i32_0 = arith.constant 0 : i32
    %c0_i32_1 = arith.constant 0 : i32
    %c0_i32_2 = arith.constant 0 : i32
    return %c0_i32, %c0_i32_0, %c0_i32_1 : i32, i32, i32
  }
  func.func @transform_4(%arg0: i32) -> (i32, i32) {
    %c0_i32 = arith.constant 0 : i32
    %c0_i32_0 = arith.constant 0 : i32
    %c0_i32_1 = arith.constant 0 : i32
    return %c0_i32, %c0_i32_0 : i32, i32
  }
  func.func @transform_5(%arg0: i32) -> (i32, i32, i32) {
    %c0_i32 = arith.constant 0 : i32
    %c0_i32_0 = arith.constant 0 : i32
    %c0_i32_1 = arith.constant 0 : i32
    return %arg0, %c0_i32, %c0_i32_0 : i32, i32, i32
  }
}

</mosaic_0001>

<llo_original>
// kernel: tpu_custom_call.1
$region0: #{tpu_custom_call.1}
  #allocation0 [shape = 'u32[]', space=smem, size = 0x4, offset = 0x4, fixed_abs, tag = 'smem constant byte address 0x4 - core index']
  #allocation1 [shape = 'u32[72,128]{1,0:T(1,128)}', space=vmem, size = 0x9000, scoped, tag = 'internal scratch']
  #allocation2 [shape = 'f32[1,8,14]{2,1,0:T(8,128)}', space=vmem, size = 0x1000, scoped, tag = 'scratch operand']
  %s0 = inlined_call_operand.vmem [shape: f32[2,4,16], index: 0, kind: input, shape index: {}]
  %s1 = inlined_call_operand.vmem [shape: f32[12,8,1], index: 1, kind: input, shape index: {}]
  %s2 = inlined_call_operand.vmem [shape: f32[8,1], index: 2, kind: input, shape index: {}]
  %s3 = inlined_call_operand.vmem [shape: f32[24,8,1], index: 3, kind: input, shape index: {}]
  %s4 = inlined_call_operand.vmem [shape: f32[8,1], index: 4, kind: input, shape index: {}]
  %s5 = inlined_call_operand.hbm [shape: f32[2,8,12], index: 5, kind: output, shape index: {}]
  %s6 = sld [smem:[#allocation0]]
  $region53: #{tpu_custom_call.1} parent=0
    _
  %s8 = ssub.s32 1, %s6
  %s9 = scalar_select 0, %s8, %s6
  $region1: #{tpu_custom_call.1} parent=0
    #allocation3 [shape = 'u8[8192]{0}', space=vmem, size = 0x2000, scoped, tag = 'output window, operand 0']
    #allocation4 [shape = 's32[2]{0}', space=sflag, size = 0x8, scoped, tag = 'scoped memory for tpu_custom_call.1']
    %10 = vsyncpa [#allocation4], 0
    %s11 = scalar_lea.sflag [#allocation4], 1
    %12 = vsyncpa %s11, 0
    loop: start=0, step=1, limit=4
    $region2: #{tpu_custom_call.1} parent=1 // loop_pre_header
      _
    $region3: #{tpu_custom_call.1} parent=1 // loop_header
      %s14 = sphi 0, %s18
      %p15 = scmp.ge.s32.totalorder %s14, 4
      %s24 = sphi 0, %s26
      %s27 = sphi 0, %s24
      %s28 = sphi 0, %s27
      %s44 = sphi 0, %s28
      %s48 = sphi 0, %s48
      %s50 = sphi 0, %s48
      %s51 = sphi 0, %s50
      %s65 = sphi 0, %s51
      %s69 = sphi 0, %s69
      %s71 = sphi 0, %s69
      %s72 = sphi 0, %s71
      %s86 = sphi 0, %s72
      %s90 = sphi 0, %s90
      %s92 = sphi 0, %s90
      %s93 = sphi 0, %s92
      %s107 = sphi 0, %s93
      %s111 = sphi 0, %s111
      %s113 = sphi 0, %s111
      %s114 = sphi 0, %s113
      %s128 = sphi 0, %s114
      %s134 = sphi 0, %s136
      %s137 = sphi 0, %s134
      %s138 = sphi 0, %s137
      %s154 = sphi 0, %s138
    $region4: #{tpu_custom_call.1} parent=1 // loop_header_branch
      %17 = sbr.rel (%p15) target = $region8
    $region5: #{tpu_custom_call.1} parent=1 // loop_body
      %s19 = ssub.s32 %s14, 1
      %s20 = ssub.s32 %s14, 2
      %s21 = sadd.s32 %s14, 1
      %s22 = ssub.s32 %s14, %s21
      %p23 = scmp.eq.s32.totalorder %s22, 0
      %s25 = sadd.s32 %s24, 1
      %s26 = scalar_select %p23, %s24, %s25
      %p29 = pneg %p23
      %p30 = scmp.eq.s32.totalorder %s14, 1
      %p31 = por %p29, %p30
      %p32 = scmp.ne.s32.totalorder %s24, %s27
      %p33 = scmp.eq.s32.totalorder %s14, 0
      %p34 = por %p32, %p33
      %p35 = scmp.ne.s32.totalorder %s24, %s27
      %p36 = scmp.eq.s32.totalorder %s19, 1
      %p37 = por %p35, %p36
      %p38 = scmp.ne.s32.totalorder %s27, %s28
      %p39 = scmp.eq.s32.totalorder %s19, 0
      %p40 = por %p38, %p39
      %p41 = scmp.ne.s32.totalorder %s27, %s28
      %p42 = scmp.eq.s32.totalorder %s20, 1
      %p43 = por %p41, %p42
      %p45 = scmp.ne.s32.totalorder %s28, %s44
      %p46 = scmp.eq.s32.totalorder %s20, 0
      %p47 = por %p45, %p46
      %s49 = sadd.s32 %s48, 1
      %p52 = scmp.eq.s32.totalorder %s14, 1
      %p53 = scmp.ne.s32.totalorder %s48, %s50
      %p54 = scmp.eq.s32.totalorder %s14, 0
      %p55 = por %p53, %p54
      %p56 = scmp.ne.s32.totalorder %s48, %s50
      %p57 = scmp.eq.s32.totalorder %s19, 1
      %p58 = por %p56, %p57
      %p59 = scmp.ne.s32.totalorder %s50, %s51
      %p60 = scmp.eq.s32.totalorder %s19, 0
      %p61 = por %p59, %p60
      %p62 = scmp.ne.s32.totalorder %s50, %s51
      %p63 = scmp.eq.s32.totalorder %s20, 1
      %p64 = por %p62, %p63
      %p66 = scmp.ne.s32.totalorder %s51, %s65
      %p67 = scmp.eq.s32.totalorder %s20, 0
      %p68 = por %p66, %p67
      %s70 = sadd.s32 %s69, 1
      %p73 = scmp.eq.s32.totalorder %s14, 1
      %p74 = scmp.ne.s32.totalorder %s69, %s71
      %p75 = scmp.eq.s32.totalorder %s14, 0
      %p76 = por %p74, %p75
      %p77 = scmp.ne.s32.totalorder %s69, %s71
      %p78 = scmp.eq.s32.totalorder %s19, 1
      %p79 = por %p77, %p78
      %p80 = scmp.ne.s32.totalorder %s71, %s72
      %p81 = scmp.eq.s32.totalorder %s19, 0
      %p82 = por %p80, %p81
      %p83 = scmp.ne.s32.totalorder %s71, %s72
      %p84 = scmp.eq.s32.totalorder %s20, 1
      %p85 = por %p83, %p84
      %p87 = scmp.ne.s32.totalorder %s72, %s86
      %p88 = scmp.eq.s32.totalorder %s20, 0
      %p89 = por %p87, %p88
      %s91 = sadd.s32 %s90, 1
      %p94 = scmp.eq.s32.totalorder %s14, 1
      %p95 = scmp.ne.s32.totalorder %s90, %s92
      %p96 = scmp.eq.s32.totalorder %s14, 0
      %p97 = por %p95, %p96
      %p98 = scmp.ne.s32.totalorder %s90, %s92
      %p99 = scmp.eq.s32.totalorder %s19, 1
      %p100 = por %p98, %p99
      %p101 = scmp.ne.s32.totalorder %s92, %s93
      %p102 = scmp.eq.s32.totalorder %s19, 0
      %p103 = por %p101, %p102
      %p104 = scmp.ne.s32.totalorder %s92, %s93
      %p105 = scmp.eq.s32.totalorder %s20, 1
      %p106 = por %p104, %p105
      %p108 = scmp.ne.s32.totalorder %s93, %s107
      %p109 = scmp.eq.s32.totalorder %s20, 0
      %p110 = por %p108, %p109
      %s112 = sadd.s32 %s111, 1
      %p115 = scmp.eq.s32.totalorder %s14, 1
      %p116 = scmp.ne.s32.totalorder %s111, %s113
      %p117 = scmp.eq.s32.totalorder %s14, 0
      %p118 = por %p116, %p117
      %p119 = scmp.ne.s32.totalorder %s111, %s113
      %p120 = scmp.eq.s32.totalorder %s19, 1
      %p121 = por %p119, %p120
      %p122 = scmp.ne.s32.totalorder %s113, %s114
      %p123 = scmp.eq.s32.totalorder %s19, 0
      %p124 = por %p122, %p123
      %p125 = scmp.ne.s32.totalorder %s113, %s114
      %p126 = scmp.eq.s32.totalorder %s20, 1
      %p127 = por %p125, %p126
      %p129 = scmp.ne.s32.totalorder %s114, %s128
      %p130 = scmp.eq.s32.totalorder %s20, 0
      %p131 = por %p129, %p130
      %s132 = ssub.s32 %s14, %s21
      %p133 = scmp.eq.s32.totalorder %s132, 0
      %s135 = sadd.s32 %s134, 1
      %s136 = scalar_select %p133, %s134, %s135
      %p139 = pneg %p133
      %p140 = scmp.eq.s32.totalorder %s14, 1
      %p141 = por %p139, %p140
      %p142 = scmp.ne.s32.totalorder %s134, %s137
      %p143 = scmp.eq.s32.totalorder %s14, 0
      %p144 = por %p142, %p143
      %p145 = scmp.ne.s32.totalorder %s134, %s137
      %p146 = scmp.eq.s32.totalorder %s19, 1
      %p147 = por %p145, %p146
      %p148 = scmp.ne.s32.totalorder %s137, %s138
      %p149 = scmp.eq.s32.totalorder %s19, 0
      %p150 = por %p148, %p149
      %p151 = scmp.ne.s32.totalorder %s137, %s138
      %p152 = scmp.eq.s32.totalorder %s20, 1
      %p153 = por %p151, %p152
      %p155 = scmp.ne.s32.totalorder %s138, %s154
      %p156 = scmp.eq.s32.totalorder %s20, 0
      %p157 = por %p155, %p156
      %p158 = scmp.le.s32.totalorder 1, %s14
      %p159 = scmp.lt.s32.totalorder %s14, 3
      %p160 = pnand %p158, %p159
      %p161 = pneg %p160
      // Predicated region
      $region9: #{tpu_custom_call.1} parent=5 // pred_check
        _
      $region10: #{tpu_custom_call.1} parent=5 // pred_check_branch
        %163 = sbr.rel (%p160) target = $region12
      $region11: #{tpu_custom_call.1} parent=5 // pred_region
        %s164 = ssub.s32 %s14, 1
        // Predicated region
        $region13: #{tpu_custom_call.1} parent=11 // pred_check
          %p165 = pneg %p61
        $region14: #{tpu_custom_call.1} parent=11 // pred_check_branch
          %167 = sbr.rel (%p165) target = $region16
        $region15: #{tpu_custom_call.1} parent=11 // pred_region
          _
        $region16: #{tpu_custom_call.1} parent=11 // pred_fallthru
          _
        // Predicated region
        $region17: #{tpu_custom_call.1} parent=11 // pred_check
          %p168 = pneg %p82
        $region18: #{tpu_custom_call.1} parent=11 // pred_check_branch
          %170 = sbr.rel (%p168) target = $region20
        $region19: #{tpu_custom_call.1} parent=11 // pred_region
          _
        $region20: #{tpu_custom_call.1} parent=11 // pred_fallthru
          _
        // Predicated region
        $region21: #{tpu_custom_call.1} parent=11 // pred_check
          %p171 = pneg %p103
        $region22: #{tpu_custom_call.1} parent=11 // pred_check_branch
          %173 = sbr.rel (%p171) target = $region24
        $region23: #{tpu_custom_call.1} parent=11 // pred_region
          _
        $region24: #{tpu_custom_call.1} parent=11 // pred_fallthru
          _
        // Predicated region
        $region25: #{tpu_custom_call.1} parent=11 // pred_check
          %p174 = pneg %p124
        $region26: #{tpu_custom_call.1} parent=11 // pred_check_branch
          %176 = sbr.rel (%p174) target = $region28
        $region27: #{tpu_custom_call.1} parent=11 // pred_region
          _
        $region28: #{tpu_custom_call.1} parent=11 // pred_fallthru
          _
      $region12: #{tpu_custom_call.1} parent=5 // pred_fallthru
        _
      %p177 = scmp.lt.s32.totalorder %s14, 2
      // Predicated region
      $region29: #{tpu_custom_call.1} parent=5 // pred_check
        %p178 = pneg %p177
      $region30: #{tpu_custom_call.1} parent=5 // pred_check_branch
        %180 = sbr.rel (%p178) target = $region32
      $region31: #{tpu_custom_call.1} parent=5 // pred_region
        // Predicated region
        $region33: #{tpu_custom_call.1} parent=31 // pred_check
          %p181 = pneg %p34
        $region34: #{tpu_custom_call.1} parent=31 // pred_check_branch
          %183 = sbr.rel (%p181) target = $region36
        $region35: #{tpu_custom_call.1} parent=31 // pred_region
          %p184 = scmp.lt.s32.totalorder %s14, 1
          %s185 = scalar_select %p184, %s14, 1
          %s186 = smul.addr %s185, 4
          %s187 = scalar_lea.vmem %s0, %s186
        $region36: #{tpu_custom_call.1} parent=31 // pred_fallthru
          _
      $region32: #{tpu_custom_call.1} parent=5 // pred_fallthru
        _
      %p188 = scmp.le.s32.totalorder 1, %s14
      %p189 = scmp.lt.s32.totalorder %s14, 3
      %p190 = pnand %p188, %p189
      %p191 = pneg %p190
      // Predicated region
      $region37: #{tpu_custom_call.1} parent=5 // pred_check
        _
      $region38: #{tpu_custom_call.1} parent=5 // pred_check_branch
        %193 = sbr.rel (%p190) target = $region40
      $region39: #{tpu_custom_call.1} parent=5 // pred_region
        %s194 = ssub.s32 %s14, 1
        %p195 = scmp.lt.s32.totalorder %s19, 1
        %s196 = scalar_select %p195, %s19, 1
        %s197 = smul.addr %s196, 4
        %s198 = scalar_lea.vmem %s0, %s197
        %p199 = pneg %p40
        %p200 = pneg %p37
        %p201 = pneg %p61
        %p202 = pneg %p58
        %p203 = pneg %p82
        %p204 = pneg %p79
        %p205 = pneg %p103
        %p206 = pneg %p100
        %p207 = pneg %p124
        %p208 = pneg %p121
        %p209 = pneg %p150
        %p210 = pneg %p147
        %s211 = sand.u32 %s137, 1
        %s212 = scalar_lea.sflag [#allocation4], %s211
        %s213 = sand.u32 %s137, 1
        %s214 = smul.addr %s213, 8
        %s215 = scalar_lea.vmem [#allocation3], %s214
        %p216 = scmp.lt.s32.totalorder %s19, 1
        %s217 = scalar_select %p216, %s19, 1
        %s218 = smul.addr %s217, 4
        %s219 = scalar_lea.vmem %s0, %s218
        %v220 = vld [vmem:[%s1] sm:$0xff]
        %v221 = vld [vmem:[%s1 + $0x8] sm:$0xff]
        %v222 = vld [vmem:[%s1 + $0x10] sm:$0xff]
        %v223 = vld [vmem:[%s1 + $0x18] sm:$0xff]
        %v224 = vld [vmem:[%s1 + $0x20] sm:$0xff]
        %v225 = vld [vmem:[%s1 + $0x28] sm:$0xff]
        %v226 = vld [vmem:[%s1 + $0x30] sm:$0xff]
        %v227 = vld [vmem:[%s1 + $0x38] sm:$0xff]
        %v228 = vld [vmem:[%s1 + $0x40] sm:$0xff]
        %v229 = vld [vmem:[%s1 + $0x48] sm:$0xff]
        %v230 = vld [vmem:[%s1 + $0x50] sm:$0xff]
        %v231 = vld [vmem:[%s1 + $0x58] sm:$0xff]
        %v232 = vld [vmem:[%s3] sm:$0xff]
        %v233 = vld [vmem:[%s3 + $0x8] sm:$0xff]
        %v234 = vld [vmem:[%s3 + $0x10] sm:$0xff]
        %v235 = vld [vmem:[%s3 + $0x18] sm:$0xff]
        %v236 = vld [vmem:[%s3 + $0x20] sm:$0xff]
        %v237 = vld [vmem:[%s3 + $0x28] sm:$0xff]
        %v238 = vld [vmem:[%s3 + $0x30] sm:$0xff]
        %v239 = vld [vmem:[%s3 + $0x38] sm:$0xff]
        %v240 = vld [vmem:[%s3 + $0x40] sm:$0xff]
        %v241 = vld [vmem:[%s3 + $0x48] sm:$0xff]
        %v242 = vld [vmem:[%s3 + $0x50] sm:$0xff]
        %v243 = vld [vmem:[%s3 + $0x58] sm:$0xff]
        %v244 = vld [vmem:[%s3 + $0x60] sm:$0xff]
        %v245 = vld [vmem:[%s3 + $0x68] sm:$0xff]
        %v246 = vld [vmem:[%s3 + $0x70] sm:$0xff]
        %v247 = vld [vmem:[%s3 + $0x78] sm:$0xff]
        %v248 = vld [vmem:[%s3 + $0x80] sm:$0xff]
        %v249 = vld [vmem:[%s3 + $0x88] sm:$0xff]
        %v250 = vld [vmem:[%s3 + $0x90] sm:$0xff]
        %v251 = vld [vmem:[%s3 + $0x98] sm:$0xff]
        %v252 = vld [vmem:[%s3 + $0xa0] sm:$0xff]
        %v253 = vld [vmem:[%s3 + $0xa8] sm:$0xff]
        %v254 = vld [vmem:[%s3 + $0xb0] sm:$0xff]
        %v255 = vld [vmem:[%s3 + $0xb8] sm:$0xff]
        %v256 = vld [vmem:[%s2] sm:$0xff]
        %v257 = vld [vmem:[%s4] sm:$0xff]
        %v258 = vld [vmem:[%s219] sm:$0x1]
        %v259 = vperm.slane %v258, 0
        %261 = vset.pattern.permute.xlu0 0
        %262 = vperm.xlu0 %261, %v220
        %v263 = vpop.permute.xlu0 %262
        %v265 = vmul.f32 %v259, %v263
        %v266 = vld [vmem:[%s219 + $0x1] sm:$0x1]
        %v267 = vperm.slane %v266, 0
        %269 = vset.pattern.permute.xlu0 0
        %270 = vperm.xlu0 %269, %v221
        %v271 = vpop.permute.xlu0 %270
        %v273 = vmul.f32 %v267, %v271
        %v274 = vld [vmem:[%s219 + $0x2] sm:$0x1]
        %v275 = vperm.slane %v274, 0
        %277 = vset.pattern.permute.xlu0 0
        %278 = vperm.xlu0 %277, %v222
        %v279 = vpop.permute.xlu0 %278
        %v281 = vmul.f32 %v275, %v279
        %v282 = vld [vmem:[%s219 + $0x3] sm:$0x1]
        %v283 = vperm.slane %v282, 0
        %285 = vset.pattern.permute.xlu0 0
        %286 = vperm.xlu0 %285, %v223
        %v287 = vpop.permute.xlu0 %286
        %v289 = vmul.f32 %v283, %v287
        %291 = vset.pattern.permute.xlu0 0
        %292 = vperm.xlu0 %291, %v224
        %v293 = vpop.permute.xlu0 %292
        %v295 = vmul.f32 %v259, %v293
        %297 = vrot.lane.b32.xlu0 %v295, 127
        %v298 = vpop.permute.xlu0 %297
        %v300 = vadd.f32 %v265, %v298
        %302 = vset.pattern.permute.xlu0 0
        %303 = vperm.xlu0 %302, %v225
        %v304 = vpop.permute.xlu0 %303
        %v306 = vmul.f32 %v267, %v304
        %308 = vrot.lane.b32.xlu0 %v306, 127
        %v309 = vpop.permute.xlu0 %308
        %v311 = vadd.f32 %v273, %v309
        %313 = vset.pattern.permute.xlu0 0
        %314 = vperm.xlu0 %313, %v226
        %v315 = vpop.permute.xlu0 %314
        %v317 = vmul.f32 %v275, %v315
        %319 = vrot.lane.b32.xlu0 %v317, 127
        %v320 = vpop.permute.xlu0 %319
        %v322 = vadd.f32 %v281, %v320
        %324 = vset.pattern.permute.xlu0 0
        %325 = vperm.xlu0 %324, %v227
        %v326 = vpop.permute.xlu0 %325
        %v328 = vmul.f32 %v283, %v326
        %330 = vrot.lane.b32.xlu0 %v328, 127
        %v331 = vpop.permute.xlu0 %330
        %v333 = vadd.f32 %v289, %v331
        %335 = vset.pattern.permute.xlu0 0
        %336 = vperm.xlu0 %335, %v228
        %v337 = vpop.permute.xlu0 %336
        %v339 = vmul.f32 %v259, %v337
        %341 = vrot.lane.b32.xlu0 %v339, 126
        %v342 = vpop.permute.xlu0 %341
        %v344 = vadd.f32 %v300, %v342
        %346 = vset.pattern.permute.xlu0 0
        %347 = vperm.xlu0 %346, %v229
        %v348 = vpop.permute.xlu0 %347
        %v350 = vmul.f32 %v267, %v348
        %352 = vrot.lane.b32.xlu0 %v350, 126
        %v353 = vpop.permute.xlu0 %352
        %v355 = vadd.f32 %v311, %v353
        %357 = vset.pattern.permute.xlu0 0
        %358 = vperm.xlu0 %357, %v230
        %v359 = vpop.permute.xlu0 %358
        %v361 = vmul.f32 %v275, %v359
        %363 = vrot.lane.b32.xlu0 %v361, 126
        %v364 = vpop.permute.xlu0 %363
        %v366 = vadd.f32 %v322, %v364
        %368 = vset.pattern.permute.xlu0 0
        %369 = vperm.xlu0 %368, %v231
        %v370 = vpop.permute.xlu0 %369
        %v372 = vmul.f32 %v283, %v370
        %374 = vrot.lane.b32.xlu0 %v372, 126
        %v375 = vpop.permute.xlu0 %374
        %v377 = vadd.f32 %v333, %v375
        %v378 = vadd.f32 %v344, %v355
        %v379 = vadd.f32 %v366, %v377
        %v380 = vadd.f32 %v378, %v379
        %382 = vset.pattern.permute.xlu0 0
        %383 = vperm.xlu0 %382, %v256
        %v384 = vpop.permute.xlu0 %383
        %v386 = vadd.f32 %v380, %v384
        %v387 = vmax.f32 %v386, 0.0
        %vm388 = vcmask 113664
        %389 = vst.msk [vmem:[#allocation2] sm:$0xff] %vm388, %v387
        %v390 = vld [vmem:[#allocation2] sm:$0x1]
        %v391 = vperm.slane %v390, 0
        %393 = vset.pattern.permute.xlu0 0
        %394 = vperm.xlu0 %393, %v232
        %v395 = vpop.permute.xlu0 %394
        %v397 = vmul.f32 %v391, %v395
        %v398 = vld [vmem:[#allocation2 + $0x1] sm:$0x1]
        %v399 = vperm.slane %v398, 0
        %401 = vset.pattern.permute.xlu0 0
        %402 = vperm.xlu0 %401, %v233
        %v403 = vpop.permute.xlu0 %402
        %v405 = vmul.f32 %v399, %v403
        %v406 = vld [vmem:[#allocation2 + $0x2] sm:$0x1]
        %v407 = vperm.slane %v406, 0
        %409 = vset.pattern.permute.xlu0 0
        %410 = vperm.xlu0 %409, %v234
        %v411 = vpop.permute.xlu0 %410
        %v413 = vmul.f32 %v407, %v411
        %v414 = vld [vmem:[#allocation2 + $0x3] sm:$0x1]
        %v415 = vperm.slane %v414, 0
        %417 = vset.pattern.permute.xlu0 0
        %418 = vperm.xlu0 %417, %v235
        %v419 = vpop.permute.xlu0 %418
        %v421 = vmul.f32 %v415, %v419
        %v422 = vld [vmem:[#allocation2 + $0x4] sm:$0x1]
        %v423 = vperm.slane %v422, 0
        %425 = vset.pattern.permute.xlu0 0
        %426 = vperm.xlu0 %425, %v236
        %v427 = vpop.permute.xlu0 %426
        %v429 = vmul.f32 %v423, %v427
        %v430 = vadd.f32 %v397, %v429
        %v431 = vld [vmem:[#allocation2 + $0x5] sm:$0x1]
        %v432 = vperm.slane %v431, 0
        %434 = vset.pattern.permute.xlu0 0
        %435 = vperm.xlu0 %434, %v237
        %v436 = vpop.permute.xlu0 %435
        %v438 = vmul.f32 %v432, %v436
        %v439 = vadd.f32 %v405, %v438
        %v440 = vld [vmem:[#allocation2 + $0x6] sm:$0x1]
        %v441 = vperm.slane %v440, 0
        %443 = vset.pattern.permute.xlu0 0
        %444 = vperm.xlu0 %443, %v238
        %v445 = vpop.permute.xlu0 %444
        %v447 = vmul.f32 %v441, %v445
        %v448 = vadd.f32 %v413, %v447
        %v449 = vld [vmem:[#allocation2 + $0x7] sm:$0x1]
        %v450 = vperm.slane %v449, 0
        %452 = vset.pattern.permute.xlu0 0
        %453 = vperm.xlu0 %452, %v239
        %v454 = vpop.permute.xlu0 %453
        %v456 = vmul.f32 %v450, %v454
        %v457 = vadd.f32 %v421, %v456
        %459 = vset.pattern.permute.xlu0 0
        %460 = vperm.xlu0 %459, %v240
        %v461 = vpop.permute.xlu0 %460
        %v463 = vmul.f32 %v391, %v461
        %465 = vrot.lane.b32.xlu0 %v463, 127
        %v466 = vpop.permute.xlu0 %465
        %v468 = vadd.f32 %v430, %v466
        %470 = vset.pattern.permute.xlu0 0
        %471 = vperm.xlu0 %470, %v241
        %v472 = vpop.permute.xlu0 %471
        %v474 = vmul.f32 %v399, %v472
        %476 = vrot.lane.b32.xlu0 %v474, 127
        %v477 = vpop.permute.xlu0 %476
        %v479 = vadd.f32 %v439, %v477
        %481 = vset.pattern.permute.xlu0 0
        %482 = vperm.xlu0 %481, %v242
        %v483 = vpop.permute.xlu0 %482
        %v485 = vmul.f32 %v407, %v483
        %487 = vrot.lane.b32.xlu0 %v485, 127
        %v488 = vpop.permute.xlu0 %487
        %v490 = vadd.f32 %v448, %v488
        %492 = vset.pattern.permute.xlu0 0
        %493 = vperm.xlu0 %492, %v243
        %v494 = vpop.permute.xlu0 %493
        %v496 = vmul.f32 %v415, %v494
        %498 = vrot.lane.b32.xlu0 %v496, 127
        %v499 = vpop.permute.xlu0 %498
        %v501 = vadd.f32 %v457, %v499
        %503 = vset.pattern.permute.xlu0 0
        %504 = vperm.xlu0 %503, %v244
        %v505 = vpop.permute.xlu0 %504
        %v507 = vmul.f32 %v423, %v505
        %509 = vrot.lane.b32.xlu0 %v507, 127
        %v510 = vpop.permute.xlu0 %509
        %v512 = vadd.f32 %v468, %v510
        %514 = vset.pattern.permute.xlu0 0
        %515 = vperm.xlu0 %514, %v245
        %v516 = vpop.permute.xlu0 %515
        %v518 = vmul.f32 %v432, %v516
        %520 = vrot.lane.b32.xlu0 %v518, 127
        %v521 = vpop.permute.xlu0 %520
        %v523 = vadd.f32 %v479, %v521
        %525 = vset.pattern.permute.xlu0 0
        %526 = vperm.xlu0 %525, %v246
        %v527 = vpop.permute.xlu0 %526
        %v529 = vmul.f32 %v441, %v527
        %531 = vrot.lane.b32.xlu0 %v529, 127
        %v532 = vpop.permute.xlu0 %531
        %v534 = vadd.f32 %v490, %v532
        %536 = vset.pattern.permute.xlu0 0
        %537 = vperm.xlu0 %536, %v247
        %v538 = vpop.permute.xlu0 %537
        %v540 = vmul.f32 %v450, %v538
        %542 = vrot.lane.b32.xlu0 %v540, 127
        %v543 = vpop.permute.xlu0 %542
        %v545 = vadd.f32 %v501, %v543
        %547 = vset.pattern.permute.xlu0 0
        %548 = vperm.xlu0 %547, %v248
        %v549 = vpop.permute.xlu0 %548
        %v551 = vmul.f32 %v391, %v549
        %553 = vrot.lane.b32.xlu0 %v551, 126
        %v554 = vpop.permute.xlu0 %553
        %v556 = vadd.f32 %v512, %v554
        %558 = vset.pattern.permute.xlu0 0
        %559 = vperm.xlu0 %558, %v249
        %v560 = vpop.permute.xlu0 %559
        %v562 = vmul.f32 %v399, %v560
        %564 = vrot.lane.b32.xlu0 %v562, 126
        %v565 = vpop.permute.xlu0 %564
        %v567 = vadd.f32 %v523, %v565
        %569 = vset.pattern.permute.xlu0 0
        %570 = vperm.xlu0 %569, %v250
        %v571 = vpop.permute.xlu0 %570
        %v573 = vmul.f32 %v407, %v571
        %575 = vrot.lane.b32.xlu0 %v573, 126
        %v576 = vpop.permute.xlu0 %575
        %v578 = vadd.f32 %v534, %v576
        %580 = vset.pattern.permute.xlu0 0
        %581 = vperm.xlu0 %580, %v251
        %v582 = vpop.permute.xlu0 %581
        %v584 = vmul.f32 %v415, %v582
        %586 = vrot.lane.b32.xlu0 %v584, 126
        %v587 = vpop.permute.xlu0 %586
        %v589 = vadd.f32 %v545, %v587
        %591 = vset.pattern.permute.xlu0 0
        %592 = vperm.xlu0 %591, %v252
        %v593 = vpop.permute.xlu0 %592
        %v595 = vmul.f32 %v423, %v593
        %597 = vrot.lane.b32.xlu0 %v595, 126
        %v598 = vpop.permute.xlu0 %597
        %v600 = vadd.f32 %v556, %v598
        %602 = vset.pattern.permute.xlu0 0
        %603 = vperm.xlu0 %602, %v253
        %v604 = vpop.permute.xlu0 %603
        %v606 = vmul.f32 %v432, %v604
        %608 = vrot.lane.b32.xlu0 %v606, 126
        %v609 = vpop.permute.xlu0 %608
        %v611 = vadd.f32 %v567, %v609
        %613 = vset.pattern.permute.xlu0 0
        %614 = vperm.xlu0 %613, %v254
        %v615 = vpop.permute.xlu0 %614
        %v617 = vmul.f32 %v441, %v615
        %619 = vrot.lane.b32.xlu0 %v617, 126
        %v620 = vpop.permute.xlu0 %619
        %v622 = vadd.f32 %v578, %v620
        %624 = vset.pattern.permute.xlu0 0
        %625 = vperm.xlu0 %624, %v255
        %v626 = vpop.permute.xlu0 %625
        %v628 = vmul.f32 %v450, %v626
        %630 = vrot.lane.b32.xlu0 %v628, 126
        %v631 = vpop.permute.xlu0 %630
        %v633 = vadd.f32 %v589, %v631
        %v634 = vadd.f32 %v600, %v611
        %v635 = vadd.f32 %v622, %v633
        %v636 = vadd.f32 %v634, %v635
        %638 = vset.pattern.permute.xlu0 0
        %639 = vperm.xlu0 %638, %v257
        %v640 = vpop.permute.xlu0 %639
        %v642 = vadd.f32 %v636, %v640
        %vm643 = vcmask 97280
        %644 = vst.msk [vmem:[%s215] sm:$0xff] %vm643, %v642
        %s645 = sand.u32 %s137, 1
        %s646 = scalar_lea.sflag [#allocation4], %s645
        %s647 = sand.u32 %s137, 1
        %s648 = smul.addr %s647, 8
        %s649 = scalar_lea.vmem [#allocation3], %s648
        // Predicated region
        $region41: #{tpu_custom_call.1} parent=39 // pred_check
          %p650 = pneg %p147
        $region42: #{tpu_custom_call.1} parent=39 // pred_check_branch
          %652 = sbr.rel (%p650) target = $region44
        $region43: #{tpu_custom_call.1} parent=39 // pred_region
          %654 = vsyncadd %s646, 0
          %s655 = smul.addr %s19, 8
          %s656 = scalar_lea.hbm %s5, %s655
          %s658 = sshll.u32 %s649, 4
          %s659 = int_to_ptr.vmem [resolvable:$true] %s658
          %s660 = sshll.u32 %s656, 4
          %s661 = int_to_ptr.hbm [resolvable:$true] %s660
          %663 = dma.vmem_to_hbm [thread:$0]  %s659, 128, %s661, %s646
        $region44: #{tpu_custom_call.1} parent=39 // pred_fallthru
          _
      $region40: #{tpu_custom_call.1} parent=5 // pred_fallthru
        _
      %p664 = scmp.le.s32.totalorder 2, %s14
      // Predicated region
      $region45: #{tpu_custom_call.1} parent=5 // pred_check
        %p665 = pneg %p664
      $region46: #{tpu_custom_call.1} parent=5 // pred_check_branch
        %667 = sbr.rel (%p665) target = $region48
      $region47: #{tpu_custom_call.1} parent=5 // pred_region
        %s668 = ssub.s32 %s14, 2
        // Predicated region
        $region49: #{tpu_custom_call.1} parent=47 // pred_check
          %p669 = pneg %p153
        $region50: #{tpu_custom_call.1} parent=47 // pred_check_branch
          %671 = sbr.rel (%p669) target = $region52
        $region51: #{tpu_custom_call.1} parent=47 // pred_region
          %s672 = sand.u32 %s138, 1
          %s673 = scalar_lea.sflag [#allocation4], %s672
          %s674 = sand.u32 %s138, 1
          %s675 = smul.addr %s674, 8
          %s676 = scalar_lea.vmem [#allocation3], %s675
          %678 = dma.done %s673, 128
        $region52: #{tpu_custom_call.1} parent=47 // pred_fallthru
          _
      $region48: #{tpu_custom_call.1} parent=5 // pred_fallthru
        _
    $region6: #{tpu_custom_call.1} parent=1 // loop_footer
      %s18 = sadd.s32 1, %s14
    $region7: #{tpu_custom_call.1} parent=1 // loop_footer_branch
      %13 = sbr.rel target = $region3
    $region8: #{tpu_custom_call.1} parent=1 // loop_exit
      _
    %679 = vsyncpa [#allocation4], 1
    %s680 = scalar_lea.sflag [#allocation4], 1
    %681 = vsyncpa %s680, 1

</llo_original>
